<compile_context>
chip_gen: v5e
topology: v5e:2x2
jax: 0.10.0
libtpu: 0.0.40
codegen_flags: <defaults>
</compile_context>

<pallas_src>
import jax
import jax.numpy as jnp
from jax.experimental import pallas as pl
from jax.experimental.pallas import tpu as pltpu

# ---- small, deterministic config consistent with Net_cnn's __init__ ----
VOCAB_SIZE = 50        # params.vocab_size
EMBED_DIM = 32         # params.embedding_dim
FEATURE_SIZE = 16      # params.feature_size
SENT_LEN = 16          # params.sentence_length
WINDOW_SIZES = (2, 3, 4)   # params.window_sizes
TAG_LEN = 8            # params.tag_len
BATCH = 2
BN_EPS = 1e-5

H_MAX = max(WINDOW_SIZES)
N_WIN = len(WINDOW_SIZES)
F_TOTAL = N_WIN * FEATURE_SIZE       # 48 conv features total
LANES = 128                          # lane-dense width for every operand
VPAD = 128                           # vocab rows per tap (padded 50 -> 128)
K_FUSED = H_MAX * VPAD               # 512: contraction of the fused matmul
BL = BATCH * SENT_LEN                # 32 token positions
B_PAD = 8                            # output rows padded to a full sublane tile

# ---- f32 constant-slab row layout (all slices sublane-aligned where it matters) ----
ROW_MASK = 0                         # [0, BL): per-(b,t) valid-time mask
ROW_FCW = BL                         # [32, 160): FC weight, (128, 128)
ROW_GAMMA = ROW_FCW + LANES          # 160
ROW_BETA = ROW_GAMMA + 1             # 161
ROW_INVCNT = ROW_BETA + 1            # 162
ROW_FCB = ROW_INVCNT + 1             # 163 (lanes >= TAG_LEN carry -1e30)
CONST_ROWS = ((ROW_FCB + 1 + 7) // 8) * 8   # 168


def _row_rotate(x, d):
    """Circular row shift: row t of the result is row (t + d) % N of x.

    Equivalent to pltpu.roll(x, shift=N - d, axis=0) / jnp.roll(x, -d, axis=0);
    written as two static sublane slices + a concat for maximally robust Mosaic
    lowering.  Wrapped rows only land on time positions that the precomputed
    valid-time mask zeroes out downstream, so no zero padding is needed.
    """
    if d == 0:
        return x
    return jnp.concatenate([x[d:, :], x[:d, :]], axis=0)


def net_cnn_kernel(ids_ref, w_ref, c_ref, out_ref):
    # ---- one-hot token encoding; vocab padded to a full 128-lane vreg width ----
    # ids are sublane-major (BL, 1): the row-wise lane-broadcast compare below
    # needs one token per sublane row (a (1, BL) lane-major layout would force
    # an in-kernel transpose costing more than the 128-byte DMA it saves).
    ids = ids_ref[...]                                            # (BL, 1) int32
    v_iota = jax.lax.broadcasted_iota(jnp.int32, (BL, VPAD), 1)
    oh = jnp.where(ids == v_iota, 1.0, 0.0)                       # (BL, 128) f32

    # ---- im2col on the ONE-HOT (not on f32 embeddings): tap d needs token t+d.
    # Pieces are exactly 128 lanes wide, so the lane concat lands on vreg
    # boundaries (no intra-vreg shuffles).
    g = jnp.concatenate([_row_rotate(oh, d) for d in range(H_MAX)],
                        axis=-1).astype(jnp.bfloat16)             # (BL, 512) bf16

    # ---- fused embedding-gather + all-window conv: ONE MXU matmul --------------
    acc = jax.lax.dot_general(
        g, w_ref[...], dimension_numbers=(((1,), (0,)), ((), ())),
        preferred_element_type=jnp.float32)                       # (BL, 128) f32
    # conv bias omitted: training-mode BatchNorm mean subtraction cancels it.
    # TODO(synk): F.dropout (train-mode RNG) has no deterministic Pallas
    # equivalent; treated as identity (inference semantics).

    # ---- precomputed constants (single lane-dense f32 slab, static slices) -----
    mask = c_ref[ROW_MASK:ROW_MASK + BL, :]                       # (BL, 128)
    gamma = c_ref[ROW_GAMMA:ROW_GAMMA + 1, :]                     # (1, 128)
    beta = c_ref[ROW_BETA:ROW_BETA + 1, :]                        # (1, 128)
    inv_cnt = c_ref[ROW_INVCNT:ROW_INVCNT + 1, :]                 # (1, 128)

    # ---- training-mode BatchNorm1d: masked single-pass batch stats -------------
    acc_m = acc * mask
    s1 = jnp.sum(acc_m, axis=0, keepdims=True)                    # (1, 128)
    s2 = jnp.sum(acc_m * acc_m, axis=0, keepdims=True)
    mean = s1 * inv_cnt
    var = jnp.maximum(s2 * inv_cnt - mean * mean, 0.0)            # biased variance
    scale = gamma * jax.lax.rsqrt(var + BN_EPS)
    shift = beta - mean * scale

    # ---- ReLU + max-pool over valid time (invalid positions masked to 0; safe
    #      because ReLU output is >= 0) -----------------------------------------
    y = jnp.maximum(acc * scale + shift, 0.0) * mask              # (BL, 128)
    pooled = jnp.max(y.reshape(BATCH, SENT_LEN, LANES), axis=1)   # (B, 128)

    # ---- fully connected + log_softmax; padding lanes carry a -1e30 bias so
    #      their exp underflows to 0 and they drop out of the normalization -----
    fc_w = c_ref[ROW_FCW:ROW_FCW + LANES, :]                      # (128, 128)
    fc_b = c_ref[ROW_FCB:ROW_FCB + 1, :]                          # (1, 128)
    logits = jax.lax.dot_general(
        pooled, fc_w, dimension_numbers=(((1,), (0,)), ((), ())),
        preferred_element_type=jnp.float32) + fc_b                # (B, 128)
    m = jnp.max(logits, axis=-1, keepdims=True)
    z = logits - m
    lse = jnp.log(jnp.sum(jnp.exp(z), axis=-1, keepdims=True))

    # ---- lane-dense (8, 128) output: zero-fill pad rows, full unmasked store ---
    out_ref[...] = jnp.concatenate(
        [z - lse, jnp.zeros((B_PAD - BATCH, LANES), jnp.float32)], axis=0)


def net_cnn_forward(s_ids, params):
    assert s_ids.shape == (BATCH, SENT_LEN), "constants are baked for this shape"
    ids = s_ids.reshape(BL, 1).astype(jnp.int32)
    vmem = pl.BlockSpec(memory_space=pltpu.MemorySpace.VMEM)
    out_pad = pl.pallas_call(
        net_cnn_kernel,
        out_shape=jax.ShapeDtypeStruct((B_PAD, LANES), jnp.float32),
        in_specs=[vmem, vmem, vmem],
        out_specs=vmem,
    )(ids, params["w_slab"], params["const_slab"])
    return out_pad[:BATCH, :TAG_LEN]


def init_params(key):
    keys = jax.random.split(key, 3 + N_WIN)
    # nn.Embedding default init: N(0, 1)
    embedding = jax.random.normal(keys[0], (VOCAB_SIZE, EMBED_DIM), jnp.float32)
    # fc: (in = feature_size * n_windows, out = tag_len), stored as (in, out)
    fc_w = 0.1 * jax.random.normal(keys[1], (F_TOTAL, TAG_LEN), jnp.float32)
    fc_b = 0.1 * jax.random.normal(keys[2], (TAG_LEN,), jnp.float32)

    # ---- bf16 weight slab: embedding folded into every conv tap ---------------
    # P_d[v, f] = sum_e embedding[v, e] * W[f, e, d], so that
    #   conv_out[b, f, t] = sum_{d < h} P_d[ids[b, t+d], f]   (+ bias, which
    # training-mode BN cancels exactly).  Taps stacked along K with the vocab
    # padded to 128 rows per tap; features padded 48 -> 128 lanes so both the
    # DMA and the MXU operand are fully lane-dense.
    w_slab = jnp.zeros((K_FUSED, LANES), jnp.float32)
    for i, h in enumerate(WINDOW_SIZES):
        # PyTorch Conv1d weight layout: (out=F, in=E, kernel=h)
        w = 0.1 * jax.random.normal(keys[3 + i], (FEATURE_SIZE, EMBED_DIM, h),
                                    jnp.float32)
        for d in range(h):
            p_d = embedding @ w[:, :, d].T                        # (V, F)
            w_slab = w_slab.at[d * VPAD:d * VPAD + VOCAB_SIZE,
                               i * FEATURE_SIZE:(i + 1) * FEATURE_SIZE].set(p_d)
    # conv biases are not materialized: training-mode BN cancels them exactly.

    # ---- f32 constant slab (one lane-dense DMA): mask, BN consts, FC ----------
    t = jnp.arange(SENT_LEN)[:, None]                             # (L, 1)
    mask_lf = jnp.concatenate(
        [jnp.broadcast_to((t < SENT_LEN - h + 1).astype(jnp.float32),
                          (SENT_LEN, FEATURE_SIZE)) for h in WINDOW_SIZES],
        axis=1)                                                   # (L, 48)
    mask_blf = jnp.tile(mask_lf, (BATCH, 1))                      # (BL, 48)
    inv_cnt = jnp.concatenate(
        [jnp.full((1, FEATURE_SIZE), 1.0 / (BATCH * (SENT_LEN - h + 1)),
                  jnp.float32) for h in WINDOW_SIZES], axis=1)    # (1, 48)
    gamma = jnp.ones((F_TOTAL,), jnp.float32)                     # BatchNorm1d init
    beta = jnp.zeros((F_TOTAL,), jnp.float32)

    slab = jnp.zeros((CONST_ROWS, LANES), jnp.float32)
    slab = slab.at[ROW_MASK:ROW_MASK + BL, 0:F_TOTAL].set(mask_blf)
    slab = slab.at[ROW_FCW:ROW_FCW + F_TOTAL, 0:TAG_LEN].set(fc_w)
    slab = slab.at[ROW_GAMMA, 0:F_TOTAL].set(gamma)
    slab = slab.at[ROW_BETA, 0:F_TOTAL].set(beta)
    slab = slab.at[ROW_INVCNT, 0:F_TOTAL].set(inv_cnt[0])
    slab = slab.at[ROW_FCB, 0:TAG_LEN].set(fc_b)
    slab = slab.at[ROW_FCB, TAG_LEN:].set(-1e30)   # log_softmax pad-lane bias

    return {
        "w_slab": w_slab.astype(jnp.bfloat16),    # (512, 128) bf16 MXU operand
        "const_slab": slab,                       # (168, 128) f32 constants
    }


if __name__ == "__main__":
    key = jax.random.PRNGKey(0)
    pkey, skey = jax.random.split(key)
    params = init_params(pkey)
    # Token ids, matching `s.to(torch.int64)` input of shape (batch, sentence_length).
    s = jax.random.randint(skey, (BATCH, SENT_LEN), 0, VOCAB_SIZE, dtype=jnp.int32)

    out = net_cnn_forward(s, params)
    out = jax.block_until_ready(out)

    assert out.shape == (BATCH, TAG_LEN)
    assert bool(jnp.all(jnp.isfinite(out)))
    # log_softmax rows must (log-)normalize to ~0.
    assert bool(jnp.allclose(jnp.sum(jnp.exp(out), axis=1), 1.0, atol=1e-4))
    print("KERNEL_OK")
</pallas_src>

<mosaic_0001>
module attributes {stable_mosaic.version = 11 : i64} {
  func.func @net_cnn_kernel(%arg0: memref<32x1xi32, #tpu.memory_space<vmem>>, %arg1: memref<512x128xbf16, #tpu.memory_space<vmem>>, %arg2: memref<168x128xf32, #tpu.memory_space<vmem>>, %arg3: memref<8x128xf32, #tpu.memory_space<vmem>>) attributes {dimension_semantics = [], scalar_prefetch = 0 : i64, scratch_operands = 0 : i64, tpu.core_type = #tpu.core_type<tc>} {
    %c0 = arith.constant 0 : index
    %c0_0 = arith.constant 0 : index
    %0 = vector.load %arg0[%c0, %c0_0] : memref<32x1xi32, #tpu.memory_space<vmem>>, vector<32x1xi32>
    %1 = tpu.iota {dimensions = array<i32: 1>} : vector<32x128xi32>
    %2 = vector.broadcast %0 : vector<32x1xi32> to vector<32x128xi32>
    %3 = arith.cmpi eq, %2, %1 : vector<32x128xi32>
    %cst = arith.constant 1.000000e+00 : f32
    %cst_1 = arith.constant 0.000000e+00 : f32
    %4 = vector.broadcast %cst : f32 to vector<32x128xf32>
    %5 = vector.broadcast %cst_1 : f32 to vector<32x128xf32>
    %6 = arith.select %3, %4, %5 : vector<32x128xi1>, vector<32x128xf32>
    %7 = vector.extract_strided_slice %6 {offsets = [1, 0], sizes = [31, 128], strides = [1, 1]} : vector<32x128xf32> to vector<31x128xf32>
    %8 = vector.extract_strided_slice %6 {offsets = [0, 0], sizes = [1, 128], strides = [1, 1]} : vector<32x128xf32> to vector<1x128xf32>
    %9 = tpu.concatenate %7, %8 in 0 : vector<31x128xf32>, vector<1x128xf32> -> vector<32x128xf32>
    %10 = vector.extract_strided_slice %6 {offsets = [2, 0], sizes = [30, 128], strides = [1, 1]} : vector<32x128xf32> to vector<30x128xf32>
    %11 = vector.extract_strided_slice %6 {offsets = [0, 0], sizes = [2, 128], strides = [1, 1]} : vector<32x128xf32> to vector<2x128xf32>
    %12 = tpu.concatenate %10, %11 in 0 : vector<30x128xf32>, vector<2x128xf32> -> vector<32x128xf32>
    %13 = vector.extract_strided_slice %6 {offsets = [3, 0], sizes = [29, 128], strides = [1, 1]} : vector<32x128xf32> to vector<29x128xf32>
    %14 = vector.extract_strided_slice %6 {offsets = [0, 0], sizes = [3, 128], strides = [1, 1]} : vector<32x128xf32> to vector<3x128xf32>
    %15 = tpu.concatenate %13, %14 in 0 : vector<29x128xf32>, vector<3x128xf32> -> vector<32x128xf32>
    %16 = tpu.concatenate %6, %9, %12, %15 in 1 : vector<32x128xf32>, vector<32x128xf32>, vector<32x128xf32>, vector<32x128xf32> -> vector<32x512xf32>
    %17 = arith.truncf %16 : vector<32x512xf32> to vector<32x512xbf16>
    %c0_2 = arith.constant 0 : index
    %c0_3 = arith.constant 0 : index
    %18 = vector.load %arg1[%c0_2, %c0_3] : memref<512x128xbf16, #tpu.memory_space<vmem>>, vector<512x128xbf16>
    %cst_4 = arith.constant dense<0.000000e+00> : vector<32x128xf32>
    %19 = tpu.matmul %17, %18, %cst_4 {dimension_numbers = #tpu.dot_dimension_numbers<[1], [0], [0], [1], [0, 0, 1, 1], [], []>} : vector<32x512xbf16>, vector<512x128xbf16>, vector<32x128xf32> -> vector<32x128xf32>
    %c0_5 = arith.constant 0 : index
    %c0_6 = arith.constant 0 : index
    %20 = vector.load %arg2[%c0_5, %c0_6] : memref<168x128xf32, #tpu.memory_space<vmem>>, vector<32x128xf32>
    %c160 = arith.constant 160 : index
    %c0_7 = arith.constant 0 : index
    %21 = vector.load %arg2[%c160, %c0_7] : memref<168x128xf32, #tpu.memory_space<vmem>>, vector<1x128xf32>
    %c161 = arith.constant 161 : index
    %c0_8 = arith.constant 0 : index
    %22 = vector.load %arg2[%c161, %c0_8] : memref<168x128xf32, #tpu.memory_space<vmem>>, vector<1x128xf32>
    %c162 = arith.constant 162 : index
    %c0_9 = arith.constant 0 : index
    %23 = vector.load %arg2[%c162, %c0_9] : memref<168x128xf32, #tpu.memory_space<vmem>>, vector<1x128xf32>
    %24 = arith.mulf %19, %20 : vector<32x128xf32>
    %cst_10 = arith.constant dense<0.000000e+00> : vector<128xf32>
    %25 = vector.multi_reduction <add>, %24, %cst_10 [0] : vector<32x128xf32> to vector<128xf32>
    %26 = vector.shape_cast %25 : vector<128xf32> to vector<1x128xf32>
    %27 = arith.mulf %24, %24 : vector<32x128xf32>
    %cst_11 = arith.constant dense<0.000000e+00> : vector<128xf32>
    %28 = vector.multi_reduction <add>, %27, %cst_11 [0] : vector<32x128xf32> to vector<128xf32>
    %29 = vector.shape_cast %28 : vector<128xf32> to vector<1x128xf32>
    %30 = arith.mulf %26, %23 : vector<1x128xf32>
    %31 = arith.mulf %29, %23 : vector<1x128xf32>
    %32 = arith.mulf %30, %30 : vector<1x128xf32>
    %33 = arith.subf %31, %32 : vector<1x128xf32>
    %cst_12 = arith.constant 0.000000e+00 : f32
    %34 = vector.broadcast %cst_12 : f32 to vector<1x128xf32>
    %35 = arith.maximumf %33, %34 : vector<1x128xf32>
    %cst_13 = arith.constant 9.99999974E-6 : f32
    %36 = vector.broadcast %cst_13 : f32 to vector<1x128xf32>
    %37 = arith.addf %35, %36 : vector<1x128xf32>
    %38 = math.rsqrt %37 : vector<1x128xf32>
    %39 = arith.mulf %21, %38 : vector<1x128xf32>
    %40 = arith.mulf %30, %39 : vector<1x128xf32>
    %41 = arith.subf %22, %40 : vector<1x128xf32>
    %42 = vector.broadcast %39 : vector<1x128xf32> to vector<32x128xf32>
    %43 = arith.mulf %19, %42 : vector<32x128xf32>
    %44 = vector.broadcast %41 : vector<1x128xf32> to vector<32x128xf32>
    %45 = arith.addf %43, %44 : vector<32x128xf32>
    %cst_14 = arith.constant 0.000000e+00 : f32
    %46 = vector.broadcast %cst_14 : f32 to vector<32x128xf32>
    %47 = arith.maximumf %45, %46 : vector<32x128xf32>
    %48 = arith.mulf %47, %20 : vector<32x128xf32>
    %49 = vector.shape_cast %48 : vector<32x128xf32> to vector<2x16x128xf32>
    %cst_15 = arith.constant dense<0xFF800000> : vector<2x128xf32>
    %50 = vector.multi_reduction <maximumf>, %49, %cst_15 [1] : vector<2x16x128xf32> to vector<2x128xf32>
    %c32 = arith.constant 32 : index
    %c0_16 = arith.constant 0 : index
    %51 = vector.load %arg2[%c32, %c0_16] : memref<168x128xf32, #tpu.memory_space<vmem>>, vector<128x128xf32>
    %c163 = arith.constant 163 : index
    %c0_17 = arith.constant 0 : index
    %52 = vector.load %arg2[%c163, %c0_17] : memref<168x128xf32, #tpu.memory_space<vmem>>, vector<1x128xf32>
    %cst_18 = arith.constant dense<0.000000e+00> : vector<2x128xf32>
    %53 = tpu.matmul %50, %51, %cst_18 {dimension_numbers = #tpu.dot_dimension_numbers<[1], [0], [0], [1], [0, 0, 1, 1], [], []>} : vector<2x128xf32>, vector<128x128xf32>, vector<2x128xf32> -> vector<2x128xf32>
    %54 = vector.broadcast %52 : vector<1x128xf32> to vector<2x128xf32>
    %55 = arith.addf %53, %54 : vector<2x128xf32>
    %cst_19 = arith.constant dense<0xFF800000> : vector<2xf32>
    %56 = vector.multi_reduction <maximumf>, %55, %cst_19 [1] : vector<2x128xf32> to vector<2xf32>
    %57 = vector.shape_cast %56 : vector<2xf32> to vector<2x1xf32>
    %58 = vector.broadcast %57 : vector<2x1xf32> to vector<2x128xf32>
    %59 = arith.subf %55, %58 : vector<2x128xf32>
    %60 = math.exp %59 : vector<2x128xf32>
    %cst_20 = arith.constant dense<0.000000e+00> : vector<2xf32>
    %61 = vector.multi_reduction <add>, %60, %cst_20 [1] : vector<2x128xf32> to vector<2xf32>
    %62 = vector.shape_cast %61 : vector<2xf32> to vector<2x1xf32>
    %63 = math.log %62 : vector<2x1xf32>
    %64 = vector.broadcast %63 : vector<2x1xf32> to vector<2x128xf32>
    %65 = arith.subf %59, %64 : vector<2x128xf32>
    %cst_21 = arith.constant 0.000000e+00 : f32
    %66 = vector.broadcast %cst_21 : f32 to vector<6x128xf32>
    %67 = tpu.concatenate %65, %66 in 0 : vector<2x128xf32>, vector<6x128xf32> -> vector<8x128xf32>
    %c0_22 = arith.constant 0 : index
    %c0_23 = arith.constant 0 : index
    %68 = vector.load %arg3[%c0_22, %c0_23] : memref<8x128xf32, #tpu.memory_space<vmem>>, vector<8x128xf32>
    tpu.vector_store %arg3[%c0_22, %c0_23], %67 {strides = array<i32>} : memref<8x128xf32, #tpu.memory_space<vmem>>, vector<8x128xf32>,
    return
  }
}

</mosaic_0001>

<llo_original>
// kernel: tpu_custom_call.1
$region0: #{tpu_custom_call.1}
  #allocation0 [shape = 'u32[]', space=smem, size = 0x4, offset = 0x4, fixed_abs, tag = 'smem constant byte address 0x4 - core index']
  #allocation1 [shape = 'u32[72,128]{1,0:T(1,128)}', space=vmem, size = 0x9000, scoped, tag = 'internal scratch']
  %s0 = inlined_call_operand.vmem [shape: s32[32,1], index: 0, kind: input, shape index: {}]
  %s1 = inlined_call_operand.hbm [shape: bf16[512,128], index: 1, kind: input, shape index: {}]
  %s2 = inlined_call_operand.hbm [shape: f32[168,128], index: 2, kind: input, shape index: {}]
  %s3 = inlined_call_operand.hbm [shape: f32[8,128], index: 3, kind: output, shape index: {}]
  %s4 = sld [smem:[#allocation0]]
  $region30: #{tpu_custom_call.1} parent=0
    _
  %s6 = ssub.s32 1, %s4
  %s7 = scalar_select 0, %s6, %s4
  $region1: #{tpu_custom_call.1} parent=0
    #allocation2 [shape = 'u8[131072]{0}', space=vmem, size = 0x20000, scoped, tag = 'input window, operand 1, single buffered']
    #allocation3 [shape = 's32[1]{0}', space=sflag, size = 0x4, scoped, tag = 'scoped memory for tpu_custom_call.1']
    #allocation4 [shape = 's32[1]{0}', space=sflag, size = 0x4, scoped, tag = 'scoped memory for tpu_custom_call.1']
    #allocation5 [shape = 'u8[86016]{0}', space=vmem, size = 0x15000, scoped, tag = 'input window, operand 2, single buffered']
    #allocation6 [shape = 's32[1]{0}', space=sflag, size = 0x4, scoped, tag = 'scoped memory for tpu_custom_call.1']
    #allocation7 [shape = 'u8[4096]{0}', space=vmem, size = 0x1000, scoped, tag = 'output window, operand 0, single buffered']
    %8 = vsyncpa [#allocation3], 0
    %9 = vsyncpa [#allocation6], 0
    %10 = vsyncpa [#allocation4], 0
    // Predicated region
    $region2: #{tpu_custom_call.1} parent=1 // pred_check
      _
    $region3: #{tpu_custom_call.1} parent=1 // pred_check_branch
      %12 = sbr.rel (0) target = $region5
    $region4: #{tpu_custom_call.1} parent=1 // pred_region
      _
    $region5: #{tpu_custom_call.1} parent=1 // pred_fallthru
      _
    // Predicated region
    $region6: #{tpu_custom_call.1} parent=1 // pred_check
      _
    $region7: #{tpu_custom_call.1} parent=1 // pred_check_branch
      %14 = sbr.rel (0) target = $region9
    $region8: #{tpu_custom_call.1} parent=1 // pred_region
      %16 = vsyncadd [#allocation3], 0
      %s17 = sshll.u32 %s1, 4
      %s18 = int_to_ptr.hbm [resolvable:$true] %s17
      %s19 = sshll.u32 [#allocation2], 4
      %s20 = int_to_ptr.vmem [resolvable:$true] %s19
      %25 = dma.hbm_to_vmem [thread:$0]  %s18, 4096, %s20, [#allocation3], 64, 64, 4
    $region9: #{tpu_custom_call.1} parent=1 // pred_fallthru
      _
    // Predicated region
    $region10: #{tpu_custom_call.1} parent=1 // pred_check
      _
    $region11: #{tpu_custom_call.1} parent=1 // pred_check_branch
      %27 = sbr.rel (0) target = $region13
    $region12: #{tpu_custom_call.1} parent=1 // pred_region
      %29 = vsyncadd [#allocation6], 0
      %s30 = sshll.u32 %s2, 4
      %s31 = int_to_ptr.hbm [resolvable:$true] %s30
      %s32 = sshll.u32 [#allocation5], 4
      %s33 = int_to_ptr.vmem [resolvable:$true] %s32
      %38 = dma.hbm_to_vmem [thread:$0]  %s31, 2688, %s33, [#allocation6], 128, 128, 8
    $region13: #{tpu_custom_call.1} parent=1 // pred_fallthru
      _
    // Predicated region
    $region14: #{tpu_custom_call.1} parent=1 // pred_check
      _
    $region15: #{tpu_custom_call.1} parent=1 // pred_check_branch
      %40 = sbr.rel (0) target = $region17
    $region16: #{tpu_custom_call.1} parent=1 // pred_region
      %42 = dma.done [#allocation3], 4096
    $region17: #{tpu_custom_call.1} parent=1 // pred_fallthru
      _
    // Predicated region
    $region18: #{tpu_custom_call.1} parent=1 // pred_check
      _
    $region19: #{tpu_custom_call.1} parent=1 // pred_check_branch
      %44 = sbr.rel (0) target = $region21
    $region20: #{tpu_custom_call.1} parent=1 // pred_region
      %46 = dma.done [#allocation6], 2688
    $region21: #{tpu_custom_call.1} parent=1 // pred_fallthru
      _
    %v47 = vld [vmem:[%s0] sm:$0xff]
    %v48 = vld [vmem:[%s0 + $0x8] sm:$0xff]
    %v49 = vld [vmem:[%s0 + $0x10] sm:$0xff]
    %v50 = vld [vmem:[%s0 + $0x18] sm:$0xff]
    %v51 = vlaneseq
    %v52 = vand.u32 %v51, 127
    %53 = vset.pattern.permute.xlu0 0
    %54 = vperm.xlu0 %53, %v47
    %v55 = vpop.permute.xlu0 %54
    %56 = vset.pattern.permute.xlu0 0
    %57 = vperm.xlu0 %56, %v48
    %v58 = vpop.permute.xlu0 %57
    %59 = vset.pattern.permute.xlu0 0
    %60 = vperm.xlu0 %59, %v49
    %v61 = vpop.permute.xlu0 %60
    %62 = vset.pattern.permute.xlu0 0
    %63 = vperm.xlu0 %62, %v50
    %v64 = vpop.permute.xlu0 %63
    %vm65 = vcmp.eq.s32.totalorder %v55, %v52
    %vm66 = vcmp.eq.s32.totalorder %v58, %v52
    %vm67 = vcmp.eq.s32.totalorder %v61, %v52
    %vm68 = vcmp.eq.s32.totalorder %v64, %v52
    %v69 = vsel %vm65, 1.0, 0.0
    %v70 = vsel %vm66, 1.0, 0.0
    %v71 = vsel %vm67, 1.0, 0.0
    %v72 = vsel %vm68, 1.0, 0.0
    %vm77 = vcmask 1046528
    %v78 = vrot.slane %v69, 1
    %v79 = vrot.slane %v70, 1
    %v80 = vsel %vm77, %v78, %v79
    %v81 = vrot.slane %v71, 1
    %v82 = vsel %vm77, %v79, %v81
    %v83 = vrot.slane %v72, 1
    %v84 = vsel %vm77, %v81, %v83
    %v90 = vsel %vm77, %v83, %v78
    %vm91 = vcmask 1045504
    %v92 = vrot.slane %v69, 2
    %v93 = vrot.slane %v70, 2
    %v94 = vsel %vm91, %v92, %v93
    %v95 = vrot.slane %v71, 2
    %v96 = vsel %vm91, %v93, %v95
    %v97 = vrot.slane %v72, 2
    %v98 = vsel %vm91, %v95, %v97
    %v104 = vsel %vm91, %v97, %v92
    %vm105 = vcmask 1044480
    %v106 = vrot.slane %v69, 3
    %v107 = vrot.slane %v70, 3
    %v108 = vsel %vm105, %v106, %v107
    %v109 = vrot.slane %v71, 3
    %v110 = vsel %vm105, %v107, %v109
    %v111 = vrot.slane %v72, 3
    %v112 = vsel %vm105, %v109, %v111
    %v118 = vsel %vm105, %v111, %v106
    %v119 = vpack.c.bf16 %v70, %v69
    %v120 = vpack.c.bf16 %v82, %v80
    %v121 = vpack.c.bf16 %v96, %v94
    %v122 = vpack.c.bf16 %v110, %v108
    %v123 = vpack.c.bf16 %v72, %v71
    %v124 = vpack.c.bf16 %v90, %v84
    %v125 = vpack.c.bf16 %v104, %v98
    %v126 = vpack.c.bf16 %v118, %v112
    %v127 = vld [vmem:[#allocation2] sm:$0xf]
    %v128 = vld [vmem:[#allocation2 + $0x4] sm:$0xf]
    %v129 = vld [vmem:[#allocation2 + $0x8] sm:$0xf]
    %v130 = vld [vmem:[#allocation2 + $0xc] sm:$0xf]
    %v131 = vld [vmem:[#allocation2 + $0x10] sm:$0xf]
    %v132 = vld [vmem:[#allocation2 + $0x14] sm:$0xf]
    %v133 = vld [vmem:[#allocation2 + $0x18] sm:$0xf]
    %v134 = vld [vmem:[#allocation2 + $0x1c] sm:$0xf]
    %v135 = vld [vmem:[#allocation2 + $0x20] sm:$0xf]
    %v136 = vld [vmem:[#allocation2 + $0x24] sm:$0xf]
    %v137 = vld [vmem:[#allocation2 + $0x28] sm:$0xf]
    %v138 = vld [vmem:[#allocation2 + $0x2c] sm:$0xf]
    %v139 = vld [vmem:[#allocation2 + $0x30] sm:$0xf]
    %v140 = vld [vmem:[#allocation2 + $0x34] sm:$0xf]
    %v141 = vld [vmem:[#allocation2 + $0x38] sm:$0xf]
    %v142 = vld [vmem:[#allocation2 + $0x3c] sm:$0xf]
    %v143 = vld [vmem:[#allocation2 + $0x40] sm:$0xf]
    %v144 = vld [vmem:[#allocation2 + $0x44] sm:$0xf]
    %v145 = vld [vmem:[#allocation2 + $0x48] sm:$0xf]
    %v146 = vld [vmem:[#allocation2 + $0x4c] sm:$0xf]
    %v147 = vld [vmem:[#allocation2 + $0x50] sm:$0xf]
    %v148 = vld [vmem:[#allocation2 + $0x54] sm:$0xf]
    %v149 = vld [vmem:[#allocation2 + $0x58] sm:$0xf]
    %v150 = vld [vmem:[#allocation2 + $0x5c] sm:$0xf]
    %v151 = vld [vmem:[#allocation2 + $0x60] sm:$0xf]
    %v152 = vld [vmem:[#allocation2 + $0x64] sm:$0xf]
    %v153 = vld [vmem:[#allocation2 + $0x68] sm:$0xf]
    %v154 = vld [vmem:[#allocation2 + $0x6c] sm:$0xf]
    %v155 = vld [vmem:[#allocation2 + $0x70] sm:$0xf]
    %v156 = vld [vmem:[#allocation2 + $0x74] sm:$0xf]
    %v157 = vld [vmem:[#allocation2 + $0x78] sm:$0xf]
    %v158 = vld [vmem:[#allocation2 + $0x7c] sm:$0xf]
    %v159 = vld [vmem:[#allocation2 + $0x80] sm:$0xf]
    %v160 = vld [vmem:[#allocation2 + $0x84] sm:$0xf]
    %v161 = vld [vmem:[#allocation2 + $0x88] sm:$0xf]
    %v162 = vld [vmem:[#allocation2 + $0x8c] sm:$0xf]
    %v163 = vld [vmem:[#allocation2 + $0x90] sm:$0xf]
    %v164 = vld [vmem:[#allocation2 + $0x94] sm:$0xf]
    %v165 = vld [vmem:[#allocation2 + $0x98] sm:$0xf]
    %v166 = vld [vmem:[#allocation2 + $0x9c] sm:$0xf]
    %v167 = vld [vmem:[#allocation2 + $0xa0] sm:$0xf]
    %v168 = vld [vmem:[#allocation2 + $0xa4] sm:$0xf]
    %v169 = vld [vmem:[#allocation2 + $0xa8] sm:$0xf]
    %v170 = vld [vmem:[#allocation2 + $0xac] sm:$0xf]
    %v171 = vld [vmem:[#allocation2 + $0xb0] sm:$0xf]
    %v172 = vld [vmem:[#allocation2 + $0xb4] sm:$0xf]
    %v173 = vld [vmem:[#allocation2 + $0xb8] sm:$0xf]
    %v174 = vld [vmem:[#allocation2 + $0xbc] sm:$0xf]
    %v175 = vld [vmem:[#allocation2 + $0xc0] sm:$0xf]
    %v176 = vld [vmem:[#allocation2 + $0xc4] sm:$0xf]
    %v177 = vld [vmem:[#allocation2 + $0xc8] sm:$0xf]
    %v178 = vld [vmem:[#allocation2 + $0xcc] sm:$0xf]
    %v179 = vld [vmem:[#allocation2 + $0xd0] sm:$0xf]
    %v180 = vld [vmem:[#allocation2 + $0xd4] sm:$0xf]
    %v181 = vld [vmem:[#allocation2 + $0xd8] sm:$0xf]
    %v182 = vld [vmem:[#allocation2 + $0xdc] sm:$0xf]
    %v183 = vld [vmem:[#allocation2 + $0xe0] sm:$0xf]
    %v184 = vld [vmem:[#allocation2 + $0xe4] sm:$0xf]
    %v185 = vld [vmem:[#allocation2 + $0xe8] sm:$0xf]
    %v186 = vld [vmem:[#allocation2 + $0xec] sm:$0xf]
    %v187 = vld [vmem:[#allocation2 + $0xf0] sm:$0xf]
    %v188 = vld [vmem:[#allocation2 + $0xf4] sm:$0xf]
    %v189 = vld [vmem:[#allocation2 + $0xf8] sm:$0xf]
    %v190 = vld [vmem:[#allocation2 + $0xfc] sm:$0xf]
    %v255 = vunpack.c.l.b16 %v127
    %v256 = vunpack.c.l.b16 %v128
    %v257 = vunpack.c.l.b16 %v129
    %v258 = vunpack.c.l.b16 %v130
    %v259 = vunpack.c.l.b16 %v131
    %v260 = vunpack.c.l.b16 %v132
    %v261 = vunpack.c.l.b16 %v133
    %v262 = vunpack.c.l.b16 %v134
    %v263 = vunpack.c.l.b16 %v135
    %v264 = vunpack.c.l.b16 %v136
    %v265 = vunpack.c.l.b16 %v137
    %v266 = vunpack.c.l.b16 %v138
    %v267 = vunpack.c.l.b16 %v139
    %v268 = vunpack.c.l.b16 %v140
    %v269 = vunpack.c.l.b16 %v141
    %v270 = vunpack.c.l.b16 %v142
    %v271 = vunpack.c.l.b16 %v143
    %v272 = vunpack.c.l.b16 %v144
    %v273 = vunpack.c.l.b16 %v145
    %v274 = vunpack.c.l.b16 %v146
    %v275 = vunpack.c.l.b16 %v147
    %v276 = vunpack.c.l.b16 %v148
    %v277 = vunpack.c.l.b16 %v149
    %v278 = vunpack.c.l.b16 %v150
    %v279 = vunpack.c.l.b16 %v151
    %v280 = vunpack.c.l.b16 %v152
    %v281 = vunpack.c.l.b16 %v153
    %v282 = vunpack.c.l.b16 %v154
    %v283 = vunpack.c.l.b16 %v155
    %v284 = vunpack.c.l.b16 %v156
    %v285 = vunpack.c.l.b16 %v157
    %v286 = vunpack.c.l.b16 %v158
    %v287 = vunpack.c.l.b16 %v159
    %v288 = vunpack.c.l.b16 %v160
    %v289 = vunpack.c.l.b16 %v161
    %v290 = vunpack.c.l.b16 %v162
    %v291 = vunpack.c.l.b16 %v163
    %v292 = vunpack.c.l.b16 %v164
    %v293 = vunpack.c.l.b16 %v165
    %v294 = vunpack.c.l.b16 %v166
    %v295 = vunpack.c.l.b16 %v167
    %v296 = vunpack.c.l.b16 %v168
    %v297 = vunpack.c.l.b16 %v169
    %v298 = vunpack.c.l.b16 %v170
    %v299 = vunpack.c.l.b16 %v171
    %v300 = vunpack.c.l.b16 %v172
    %v301 = vunpack.c.l.b16 %v173
    %v302 = vunpack.c.l.b16 %v174
    %v303 = vunpack.c.l.b16 %v175
    %v304 = vunpack.c.l.b16 %v176
    %v305 = vunpack.c.l.b16 %v177
    %v306 = vunpack.c.l.b16 %v178
    %v307 = vunpack.c.l.b16 %v179
    %v308 = vunpack.c.l.b16 %v180
    %v309 = vunpack.c.l.b16 %v181
    %v310 = vunpack.c.l.b16 %v182
    %v311 = vunpack.c.l.b16 %v183
    %v312 = vunpack.c.l.b16 %v184
    %v313 = vunpack.c.l.b16 %v185
    %v314 = vunpack.c.l.b16 %v186
    %v315 = vunpack.c.l.b16 %v187
    %v316 = vunpack.c.l.b16 %v188
    %v317 = vunpack.c.l.b16 %v189
    %v318 = vunpack.c.l.b16 %v190
    %v319 = vpack.c.b16 %v256, %v255
    %v320 = vpack.c.b16 %v258, %v257
    %v321 = vpack.c.b16 %v260, %v259
    %v322 = vpack.c.b16 %v262, %v261
    %v323 = vpack.c.b16 %v264, %v263
    %v324 = vpack.c.b16 %v266, %v265
    %v325 = vpack.c.b16 %v268, %v267
    %v326 = vpack.c.b16 %v270, %v269
    %v327 = vpack.c.b16 %v272, %v271
    %v328 = vpack.c.b16 %v274, %v273
    %v329 = vpack.c.b16 %v276, %v275
    %v330 = vpack.c.b16 %v278, %v277
    %v331 = vpack.c.b16 %v280, %v279
    %v332 = vpack.c.b16 %v282, %v281
    %v333 = vpack.c.b16 %v284, %v283
    %v334 = vpack.c.b16 %v286, %v285
    %v335 = vpack.c.b16 %v288, %v287
    %v336 = vpack.c.b16 %v290, %v289
    %v337 = vpack.c.b16 %v292, %v291
    %v338 = vpack.c.b16 %v294, %v293
    %v339 = vpack.c.b16 %v296, %v295
    %v340 = vpack.c.b16 %v298, %v297
    %v341 = vpack.c.b16 %v300, %v299
    %v342 = vpack.c.b16 %v302, %v301
    %v343 = vpack.c.b16 %v304, %v303
    %v344 = vpack.c.b16 %v306, %v305
    %v345 = vpack.c.b16 %v308, %v307
    %v346 = vpack.c.b16 %v310, %v309
    %v347 = vpack.c.b16 %v312, %v311
    %v348 = vpack.c.b16 %v314, %v313
    %v349 = vpack.c.b16 %v316, %v315
    %v350 = vpack.c.b16 %v318, %v317
    %383 = vmatpush.bf16.msra.mxu0 %v326
    %384 = vmatpush.bf16.msra.mxu0 %v325
    %385 = vmatpush.bf16.msra.mxu0 %v324
    %386 = vmatpush.bf16.msra.mxu0 %v323
    %387 = vmatpush.bf16.msra.mxu0 %v322
    %388 = vmatpush.bf16.msra.mxu0 %v321
    %389 = vmatpush.bf16.msra.mxu0 %v320
    %390 = vmatpush.bf16.msra.mxu0 %v319
    %391 = vmatmul.bf16.gmra.mxu0 %v119
    %v392 = vpop.f32.mrf.mxu0
    %v393 = vadd.f32 0.0, %v392
    %v394 = vpop.f32.mrf.mxu0
    %v395 = vadd.f32 0.0, %v394
    %396 = vmatmul.bf16.gmra.mxu0 %v123
    %v397 = vpop.f32.mrf.mxu0
    %v398 = vadd.f32 0.0, %v397
    %v399 = vpop.f32.mrf.mxu0
    %v400 = vadd.f32 0.0, %v399
    %401 = vdwg.mxu0
    %402 = vmatpush.bf16.msra.mxu0 %v334
    %403 = vmatpush.bf16.msra.mxu0 %v333
    %404 = vmatpush.bf16.msra.mxu0 %v332
    %405 = vmatpush.bf16.msra.mxu0 %v331
    %406 = vmatpush.bf16.msra.mxu0 %v330
    %407 = vmatpush.bf16.msra.mxu0 %v329
    %408 = vmatpush.bf16.msra.mxu0 %v328
    %409 = vmatpush.bf16.msra.mxu0 %v327
    %410 = vmatmul.bf16.gmra.mxu0 %v120
    %v411 = vpop.f32.mrf.mxu0
    %v412 = vadd.f32 %v393, %v411
    %v413 = vpop.f32.mrf.mxu0
    %v414 = vadd.f32 %v395, %v413
    %415 = vmatmul.bf16.gmra.mxu0 %v124
    %v416 = vpop.f32.mrf.mxu0
    %v417 = vadd.f32 %v398, %v416
    %v418 = vpop.f32.mrf.mxu0
    %v419 = vadd.f32 %v400, %v418
    %420 = vdwg.mxu0
    %421 = vmatpush.bf16.msra.mxu0 %v342
    %422 = vmatpush.bf16.msra.mxu0 %v341
    %423 = vmatpush.bf16.msra.mxu0 %v340
    %424 = vmatpush.bf16.msra.mxu0 %v339
    %425 = vmatpush.bf16.msra.mxu0 %v338
    %426 = vmatpush.bf16.msra.mxu0 %v337
    %427 = vmatpush.bf16.msra.mxu0 %v336
    %428 = vmatpush.bf16.msra.mxu0 %v335
    %429 = vmatmul.bf16.gmra.mxu0 %v121
    %v430 = vpop.f32.mrf.mxu0
    %v431 = vadd.f32 %v412, %v430
    %v432 = vpop.f32.mrf.mxu0
    %v433 = vadd.f32 %v414, %v432
    %434 = vmatmul.bf16.gmra.mxu0 %v125
    %v435 = vpop.f32.mrf.mxu0
    %v436 = vadd.f32 %v417, %v435
    %v437 = vpop.f32.mrf.mxu0
    %v438 = vadd.f32 %v419, %v437
    %439 = vdwg.mxu0
    %440 = vmatpush.bf16.msra.mxu0 %v350
    %441 = vmatpush.bf16.msra.mxu0 %v349
    %442 = vmatpush.bf16.msra.mxu0 %v348
    %443 = vmatpush.bf16.msra.mxu0 %v347
    %444 = vmatpush.bf16.msra.mxu0 %v346
    %445 = vmatpush.bf16.msra.mxu0 %v345
    %446 = vmatpush.bf16.msra.mxu0 %v344
    %447 = vmatpush.bf16.msra.mxu0 %v343
    %448 = vmatmul.bf16.gmra.mxu0 %v122
    %v449 = vpop.f32.mrf.mxu0
    %v450 = vadd.f32 %v431, %v449
    %v451 = vpop.f32.mrf.mxu0
    %v452 = vadd.f32 %v433, %v451
    %453 = vmatmul.bf16.gmra.mxu0 %v126
    %v454 = vpop.f32.mrf.mxu0
    %v455 = vadd.f32 %v436, %v454
    %v456 = vpop.f32.mrf.mxu0
    %v457 = vadd.f32 %v438, %v456
    %458 = vdwg.mxu0
    %v459 = vld [vmem:[#allocation5] sm:$0xff]
    %v460 = vld [vmem:[#allocation5 + $0x8] sm:$0xff]
    %v461 = vld [vmem:[#allocation5 + $0x10] sm:$0xff]
    %v462 = vld [vmem:[#allocation5 + $0x18] sm:$0xff]
    %v463 = vld [vmem:[#allocation5 + $0xa0] sm:$0x1]
    %v464 = vld [vmem:[#allocation5 + $0xa1] sm:$0x1]
    %v465 = vld [vmem:[#allocation5 + $0xa2] sm:$0x1]
    %v466 = vmul.f32 %v450, %v459
    %v467 = vmul.f32 %v452, %v460
    %v468 = vmul.f32 %v455, %v461
    %v469 = vmul.f32 %v457, %v462
    %v470 = vadd.f32 %v466, %v467
    %v471 = vadd.f32 %v470, %v468
    %v472 = vadd.f32 %v471, %v469
    %v473 = vrot.slane %v472, 4
    %v474 = vadd.f32 %v472, %v473
    %v475 = vrot.slane %v474, 2
    %v476 = vadd.f32 %v474, %v475
    %v477 = vrot.slane %v476, 1
    %v478 = vadd.f32 %v476, %v477
    %v479 = vmul.f32 %v466, %v466
    %v480 = vmul.f32 %v467, %v467
    %v481 = vmul.f32 %v468, %v468
    %v482 = vmul.f32 %v469, %v469
    %v483 = vadd.f32 %v479, %v480
    %v484 = vadd.f32 %v483, %v481
    %v485 = vadd.f32 %v484, %v482
    %v486 = vrot.slane %v485, 4
    %v487 = vadd.f32 %v485, %v486
    %v488 = vrot.slane %v487, 2
    %v489 = vadd.f32 %v487, %v488
    %v490 = vrot.slane %v489, 1
    %v491 = vadd.f32 %v489, %v490
    %v492 = vmul.f32 %v478, %v465
    %v493 = vmul.f32 %v491, %v465
    %v494 = vmul.f32 %v492, %v492
    %v495 = vsub.f32 %v493, %v494
    %v496 = vmax.f32 %v495, 0.0
    %v497 = vadd.f32 %v496, 1e-05
    %v498 = vrsqrt.pop %v497
    %v499 = vmul.f32 %v498, %v497
    %v500 = vmul.f32 %v499, %v498
    %v501 = vmul.f32 0.5, %v500
    %v502 = vsub.f32 1.5, %v501
    %v503 = vmul.f32 %v498, %v502
    %vm504 = vweird.f32 %v497
    %vm505 = vweird.f32 %v498
    %vm506 = vmor %vm504, %vm505
    %v507 = vsel %vm506, %v498, %v503
    %v508 = vmul.f32 %v463, %v507
    %v509 = vmul.f32 %v492, %v508
    %v510 = vsub.f32 %v464, %v509
    %v511 = vperm.slane %v508, 0
    %v512 = vmul.f32 %v450, %v511
    %v513 = vmul.f32 %v452, %v511
    %v514 = vmul.f32 %v455, %v511
    %v515 = vmul.f32 %v457, %v511
    %v516 = vperm.slane %v510, 0
    %v517 = vadd.f32 %v512, %v516
    %v518 = vadd.f32 %v513, %v516
    %v519 = vadd.f32 %v514, %v516
    %v520 = vadd.f32 %v515, %v516
    %v521 = vmax.f32 %v517, 0.0
    %v522 = vmax.f32 %v518, 0.0
    %v523 = vmax.f32 %v519, 0.0
    %v524 = vmax.f32 %v520, 0.0
    %v525 = vmul.f32 %v521, %v459
    %v526 = vmul.f32 %v522, %v460
    %v527 = vmul.f32 %v523, %v461
    %v528 = vmul.f32 %v524, %v462
    %v529 = vmax.f32 %v525, %v526
    %v530 = vrot.slane %v529, 4
    %v531 = vmax.f32 %v529, %v530
    %v532 = vrot.slane %v531, 2
    %v533 = vmax.f32 %v531, %v532
    %v534 = vrot.slane %v533, 1
    %v535 = vmax.f32 %v533, %v534
    %v536 = vmax.f32 %v527, %v528
    %v537 = vrot.slane %v536, 4
    %v538 = vmax.f32 %v536, %v537
    %v539 = vrot.slane %v538, 2
    %v540 = vmax.f32 %v538, %v539
    %v541 = vrot.slane %v540, 1
    %v542 = vmax.f32 %v540, %v541
    %v543 = vld [vmem:[#allocation5 + $0x20] sm:$0xff]
    %v544 = vld [vmem:[#allocation5 + $0x28] sm:$0xff]
    %v545 = vld [vmem:[#allocation5 + $0x30] sm:$0xff]
    %v546 = vld [vmem:[#allocation5 + $0x38] sm:$0xff]
    %v547 = vld [vmem:[#allocation5 + $0x40] sm:$0xff]
    %v548 = vld [vmem:[#allocation5 + $0x48] sm:$0xff]
    %v549 = vld [vmem:[#allocation5 + $0x50] sm:$0xff]
    %v550 = vld [vmem:[#allocation5 + $0x58] sm:$0xff]
    %v551 = vld [vmem:[#allocation5 + $0x60] sm:$0xff]
    %v552 = vld [vmem:[#allocation5 + $0x68] sm:$0xff]
    %v553 = vld [vmem:[#allocation5 + $0x70] sm:$0xff]
    %v554 = vld [vmem:[#allocation5 + $0x78] sm:$0xff]
    %v555 = vld [vmem:[#allocation5 + $0x80] sm:$0xff]
    %v556 = vld [vmem:[#allocation5 + $0x88] sm:$0xff]
    %v557 = vld [vmem:[#allocation5 + $0x90] sm:$0xff]
    %v558 = vld [vmem:[#allocation5 + $0x98] sm:$0xff]
    %v559 = vld [vmem:[#allocation5 + $0xa3] sm:$0x1]
    %v560 = vperm.slane %v559, 0
    %vm563 = vcmask 1041409
    %v564 = vsel %vm563, %v542, %v535
    %566 = vmatpush.msra.mxu0 %v558
    %567 = vmatpush.msra.mxu0 %v557
    %568 = vmatpush.msra.mxu0 %v556
    %569 = vmatpush.msra.mxu0 %v555
    %570 = vmatpush.msra.mxu0 %v554
    %571 = vmatpush.msra.mxu0 %v553
    %572 = vmatpush.msra.mxu0 %v552
    %573 = vmatpush.msra.mxu0 %v551
    %574 = vmatpush.msra.mxu0 %v550
    %575 = vmatpush.msra.mxu0 %v549
    %576 = vmatpush.msra.mxu0 %v548
    %577 = vmatpush.msra.mxu0 %v547
    %578 = vmatpush.msra.mxu0 %v546
    %579 = vmatpush.msra.mxu0 %v545
    %580 = vmatpush.msra.mxu0 %v544
    %581 = vmatpush.msra.mxu0 %v543
    %582 = vmatmul.f32.gmra.mxu0 %v564
    %v583 = vpop.f32.mrf.mxu0
    %v584 = vadd.f32 %v560, %v583
    %585 = vdwg.mxu0
    %vm586 = vcmask 1041408
    %v587 = vsel %vm586, %v584, -inf
    %588 = vmax.xlane.f32.xlu0 %v587
    %v589 = vpop.xlane.xlu0 %588
    %v590 = vsub.f32 %v584, %v589
    %v591 = vmul.f32 %v590, 1.442695
    %v592 = vpow.pop %v591
    %v593 = vsel %vm586, %v592, 0.0
    %594 = vadd.xlane.f32.xlu0 %v593
    %v595 = vpop.xlane.xlu0 %594
    %v596 = vlog2.pop %v595
    %v597 = vmul.f32 %v596, 0.6931472
    %v598 = vsub.f32 %v590, %v597
    %v599 = vsel %vm586, %v598, 0.0
    %600 = vst [vmem:[#allocation7] sm:$0xff] %v599
    // Predicated region
    $region22: #{tpu_custom_call.1} parent=1 // pred_check
      _
    $region23: #{tpu_custom_call.1} parent=1 // pred_check_branch
      %602 = sbr.rel (0) target = $region25
    $region24: #{tpu_custom_call.1} parent=1 // pred_region
      %604 = vsyncadd [#allocation4], 0
      %s606 = sshll.u32 [#allocation7], 4
      %s607 = int_to_ptr.vmem [resolvable:$true] %s606
      %s608 = sshll.u32 %s3, 4
      %s609 = int_to_ptr.hbm [resolvable:$true] %s608
      %611 = dma.vmem_to_hbm [thread:$0]  %s607, 128, %s609, [#allocation4]
    $region25: #{tpu_custom_call.1} parent=1 // pred_fallthru
      _
    // Predicated region
    $region26: #{tpu_custom_call.1} parent=1 // pred_check
      _
    $region27: #{tpu_custom_call.1} parent=1 // pred_check_branch
      %613 = sbr.rel (0) target = $region29
    $region28: #{tpu_custom_call.1} parent=1 // pred_region
      %615 = dma.done [#allocation4], 128
    $region29: #{tpu_custom_call.1} parent=1 // pred_fallthru
      _
    %616 = vsyncpa [#allocation3], 1
    %617 = vsyncpa [#allocation6], 1
    %618 = vsyncpa [#allocation4], 1

</llo_original>
